<compile_context>
chip_gen: v6e
topology: v6e:2x2x1
jax: 0.10.0
libtpu: 0.0.40
codegen_flags: <defaults>
</compile_context>

<pallas_src>
import jax
import jax.numpy as jnp
from jax.experimental import pallas as pl
from jax.experimental.pallas import tpu as pltpu

EPS = 1e-5
LANE = 128


def _round_up(n, m=LANE):
    return ((n + m - 1) // m) * m


def make_fused_mlp_kernel(n_layers):
    """Fused kernel: refs = (x, w0, b0, ..., w_{L-1}, b_{L-1}, o)."""

    def kernel(x_ref, *refs):
        o_ref = refs[-1]
        act = x_ref[...].astype(jnp.float32)

        if n_layers > 1:
            # First hidden layer: Linear -> Sigmoid (its BN is folded into layer 1).
            w0 = refs[0][...]
            b0 = refs[1][...].astype(jnp.float32)        # (1, D_out_p) lane vector
            h0 = jnp.dot(act.astype(w0.dtype), w0,
                         preferred_element_type=jnp.float32) + b0
            act = jax.nn.sigmoid(h0)                     # element-wise stays f32 (v5e: no bf16 VPU/EUP)
            start = 1
        else:
            start = 0

        for l in range(start, n_layers):
            w = refs[2 * l][...]
            b = refs[2 * l + 1][...].astype(jnp.float32)

            # BatchNorm1d(affine=False) over the batch on `act`, folded into this
            # layer's Linear:
            #   ((act - mean)*invstd) @ W + b == act @ (invstd_col*W) + (b - mean @ (invstd_col*W))
            mean = jnp.mean(act, axis=0, keepdims=True)                      # (1, D)
            var = jnp.mean(act * act, axis=0, keepdims=True) - mean * mean   # E[x^2]-E[x]^2
            invstd = jax.lax.rsqrt(jnp.maximum(var, 0.0) + EPS)              # (1, D), guarded
            w_scaled = w.astype(jnp.float32) * jnp.transpose(invstd)         # rows scaled by invstd
            b_eff = b - jnp.dot(mean, w_scaled, preferred_element_type=jnp.float32)

            h = jnp.dot(act.astype(w.dtype), w_scaled.astype(w.dtype),
                        preferred_element_type=jnp.float32) + b_eff
            act = jax.nn.sigmoid(h) if l < n_layers - 1 else h

        o_ref[...] = act.astype(o_ref.dtype)

    return kernel


def init_mlp_params(key, layer_sizes, input_size):
    """Deterministic parameter init matching nn.Linear shapes (true, unpadded).

    Weight for layer l: (in_l, out_l) (pre-transposed vs. PyTorch's (out, in)), bias (1, out_l).
    """
    sizes = [input_size] + list(layer_sizes)
    params = []
    for l in range(len(sizes) - 1):
        key, kw, kb = jax.random.split(key, 3)
        bound = 1.0 / jnp.sqrt(sizes[l])
        w = jax.random.uniform(kw, (sizes[l], sizes[l + 1]),
                               minval=-bound, maxval=bound, dtype=jnp.float32)
        b = jax.random.uniform(kb, (1, sizes[l + 1]),
                               minval=-bound, maxval=bound, dtype=jnp.float32)
        params.append((w, b))
    return params


def pack_mlp_params(params, matmul_dtype=jnp.float32):
    """Pad each layer's OUTPUT dim to a 128-lane multiple and cast weights ONCE.

    Contraction (K) dims are not padded: layer 0 keeps the true input width; layer
    l>0 uses the previous layer's padded output width (extra rows are zero). Done
    once at init so the per-call wrapper does no padding work. Biases stay f32
    (added post-accumulation); weights use `matmul_dtype` (f32 or bf16 MXU operands).
    """
    flat = []
    prev = params[0][0].shape[0]                     # true input width (un-padded K)
    for (w, b) in params:
        di, do = w.shape
        do_p = _round_up(do)
        w_p = jnp.zeros((prev, do_p), dtype=matmul_dtype)
        w_p = w_p.at[:di, :do].set(w.astype(matmul_dtype))
        b_p = jnp.zeros((1, do_p), dtype=jnp.float32)
        b_p = b_p.at[:, :do].set(b.astype(jnp.float32))
        flat += [w_p, b_p]
        prev = do_p
    return flat


def _pick_vmem_limit(total_arg_bytes):
    """Per-generation VMEM ceiling instead of a hard-coded 32 MiB."""
    try:
        cap = int(pltpu.get_tpu_info().vmem_capacity_bytes)
    except Exception:
        cap = 64 * 1024 * 1024                      # conservative (v7x per-TC VMEM)
    want = 4 * total_arg_bytes + (8 << 20)          # headroom for intermediates
    return int(min(max(want, 32 << 20), int(cap * 0.9)))


def mlp_forward(x, packed_params, d_out):
    """Fused forward pass in a single pallas_call; returns (N, d_out)."""
    n_layers = len(packed_params) // 2
    n = x.shape[0]
    d_out_p = packed_params[-2].shape[1]

    flat_inputs = [x.astype(jnp.float32)] + list(packed_params)
    total_bytes = sum(int(a.size) * a.dtype.itemsize for a in flat_inputs) + n * d_out_p * 4

    out_p = pl.pallas_call(
        make_fused_mlp_kernel(n_layers),
        out_shape=jax.ShapeDtypeStruct((n, d_out_p), jnp.float32),
        in_specs=[pl.BlockSpec(memory_space=pltpu.MemorySpace.VMEM)] * len(flat_inputs),
        out_specs=pl.BlockSpec(memory_space=pltpu.MemorySpace.VMEM),
        compiler_params=pltpu.CompilerParams(vmem_limit_bytes=_pick_vmem_limit(total_bytes)),
    )(*flat_inputs)

    return out_p[:, :d_out]


def mlp_forward_ref(x, params):
    """Pure-JAX reference matching the PyTorch module (unpadded, f32)."""
    n_layers = len(params)
    for l, (w, b) in enumerate(params):
        if l == n_layers - 1:
            mean = jnp.mean(x, axis=0, keepdims=True)
            var = jnp.mean((x - mean) ** 2, axis=0, keepdims=True)
            x = ((x - mean) / jnp.sqrt(var + EPS)) @ w + b
        else:
            h = jax.nn.sigmoid(x @ w + b)
            mean = jnp.mean(h, axis=0, keepdims=True)
            var = jnp.mean((h - mean) ** 2, axis=0, keepdims=True)
            x = (h - mean) / jnp.sqrt(var + EPS)
    return x


if __name__ == "__main__":
    key = jax.random.PRNGKey(0)
    k_in, k_params = jax.random.split(key)

    # Small shapes consistent with the module's forward: x is (batch, input_size).
    batch = 8
    input_size = 16
    layer_sizes = [32, 32, 8]          # two hidden layers + output layer

    x = jax.random.normal(k_in, (batch, input_size), dtype=jnp.float32)
    params = init_mlp_params(k_params, layer_sizes, input_size)
    d_out = layer_sizes[-1]

    ref = mlp_forward_ref(x, params)
    fwd = jax.jit(lambda xx, pp: mlp_forward(xx, pp, d_out))

    # f32 MXU operands: semantics check against the PyTorch-equivalent reference.
    packed_f32 = pack_mlp_params(params, jnp.float32)
    out_f32 = jax.block_until_ready(fwd(x, packed_f32))
    assert out_f32.shape == (batch, d_out)
    assert jnp.allclose(out_f32, ref, atol=1e-3, rtol=1e-3), "f32 mismatch vs reference"

    # bf16 MXU operands (v6e/v7x fast path): f32 accumulation / element-wise math,
    # so only matmul-operand rounding separates it from the f32 reference.
    packed_bf16 = pack_mlp_params(params, jnp.bfloat16)
    out_bf16 = jax.block_until_ready(fwd(x, packed_bf16))
    assert out_bf16.shape == (batch, d_out)
    assert bool(jnp.all(jnp.isfinite(out_bf16)))
    assert jnp.allclose(out_bf16, ref, atol=0.3, rtol=0.3), "bf16 path diverged"

    print("KERNEL_OK")
</pallas_src>

<mosaic_0001>
module attributes {stable_mosaic.version = 11 : i64} {
  func.func @kernel(%arg0: memref<8x16xf32, #tpu.memory_space<vmem>>, %arg1: memref<16x128xf32, #tpu.memory_space<vmem>>, %arg2: memref<1x128xf32, #tpu.memory_space<vmem>>, %arg3: memref<128x128xf32, #tpu.memory_space<vmem>>, %arg4: memref<1x128xf32, #tpu.memory_space<vmem>>, %arg5: memref<128x128xf32, #tpu.memory_space<vmem>>, %arg6: memref<1x128xf32, #tpu.memory_space<vmem>>, %arg7: memref<8x128xf32, #tpu.memory_space<vmem>>) attributes {dimension_semantics = [], scalar_prefetch = 0 : i64, scratch_operands = 0 : i64, tpu.core_type = #tpu.core_type<tc>} {
    %c0 = arith.constant 0 : index
    %c0_0 = arith.constant 0 : index
    %0 = vector.load %arg0[%c0, %c0_0] : memref<8x16xf32, #tpu.memory_space<vmem>>, vector<8x16xf32>
    %c0_1 = arith.constant 0 : index
    %c0_2 = arith.constant 0 : index
    %1 = vector.load %arg1[%c0_1, %c0_2] : memref<16x128xf32, #tpu.memory_space<vmem>>, vector<16x128xf32>
    %c0_3 = arith.constant 0 : index
    %c0_4 = arith.constant 0 : index
    %2 = vector.load %arg2[%c0_3, %c0_4] : memref<1x128xf32, #tpu.memory_space<vmem>>, vector<1x128xf32>
    %cst = arith.constant dense<0.000000e+00> : vector<8x128xf32>
    %3 = tpu.matmul %0, %1, %cst {dimension_numbers = #tpu.dot_dimension_numbers<[1], [0], [0], [1], [0, 0, 1, 1], [], []>} : vector<8x16xf32>, vector<16x128xf32>, vector<8x128xf32> -> vector<8x128xf32>
    %4 = vector.broadcast %2 : vector<1x128xf32> to vector<8x128xf32>
    %5 = arith.addf %3, %4 : vector<8x128xf32>
    %6 = arith.negf %5 : vector<8x128xf32>
    %7 = math.exp %6 : vector<8x128xf32>
    %cst_5 = arith.constant 1.000000e+00 : f32
    %8 = vector.broadcast %cst_5 : f32 to vector<8x128xf32>
    %9 = arith.addf %8, %7 : vector<8x128xf32>
    %10 = arith.divf %8, %9 : vector<8x128xf32>
    %c0_6 = arith.constant 0 : index
    %c0_7 = arith.constant 0 : index
    %11 = vector.load %arg3[%c0_6, %c0_7] : memref<128x128xf32, #tpu.memory_space<vmem>>, vector<128x128xf32>
    %c0_8 = arith.constant 0 : index
    %c0_9 = arith.constant 0 : index
    %12 = vector.load %arg4[%c0_8, %c0_9] : memref<1x128xf32, #tpu.memory_space<vmem>>, vector<1x128xf32>
    %cst_10 = arith.constant dense<0.000000e+00> : vector<128xf32>
    %13 = vector.multi_reduction <add>, %10, %cst_10 [0] : vector<8x128xf32> to vector<128xf32>
    %14 = vector.shape_cast %13 : vector<128xf32> to vector<1x128xf32>
    %cst_11 = arith.constant 8.000000e+00 : f32
    %15 = vector.broadcast %cst_11 : f32 to vector<1x128xf32>
    %16 = arith.divf %14, %15 : vector<1x128xf32>
    %17 = arith.mulf %10, %10 : vector<8x128xf32>
    %cst_12 = arith.constant dense<0.000000e+00> : vector<128xf32>
    %18 = vector.multi_reduction <add>, %17, %cst_12 [0] : vector<8x128xf32> to vector<128xf32>
    %19 = vector.shape_cast %18 : vector<128xf32> to vector<1x128xf32>
    %cst_13 = arith.constant 8.000000e+00 : f32
    %20 = vector.broadcast %cst_13 : f32 to vector<1x128xf32>
    %21 = arith.divf %19, %20 : vector<1x128xf32>
    %22 = arith.mulf %16, %16 : vector<1x128xf32>
    %23 = arith.subf %21, %22 : vector<1x128xf32>
    %cst_14 = arith.constant 0.000000e+00 : f32
    %24 = vector.broadcast %cst_14 : f32 to vector<1x128xf32>
    %25 = arith.maximumf %23, %24 : vector<1x128xf32>
    %cst_15 = arith.constant 9.99999974E-6 : f32
    %26 = vector.broadcast %cst_15 : f32 to vector<1x128xf32>
    %27 = arith.addf %25, %26 : vector<1x128xf32>
    %28 = math.rsqrt %27 : vector<1x128xf32>
    %29 = tpu.transpose %28, [1, 0] : vector<1x128xf32> -> vector<128x1xf32>
    %30 = vector.broadcast %29 : vector<128x1xf32> to vector<128x128xf32>
    %31 = arith.mulf %11, %30 : vector<128x128xf32>
    %cst_16 = arith.constant dense<0.000000e+00> : vector<1x128xf32>
    %32 = tpu.matmul %16, %31, %cst_16 {dimension_numbers = #tpu.dot_dimension_numbers<[1], [0], [0], [1], [0, 0, 1, 1], [], []>} : vector<1x128xf32>, vector<128x128xf32>, vector<1x128xf32> -> vector<1x128xf32>
    %33 = arith.subf %12, %32 : vector<1x128xf32>
    %cst_17 = arith.constant dense<0.000000e+00> : vector<8x128xf32>
    %34 = tpu.matmul %10, %31, %cst_17 {dimension_numbers = #tpu.dot_dimension_numbers<[1], [0], [0], [1], [0, 0, 1, 1], [], []>} : vector<8x128xf32>, vector<128x128xf32>, vector<8x128xf32> -> vector<8x128xf32>
    %35 = vector.broadcast %33 : vector<1x128xf32> to vector<8x128xf32>
    %36 = arith.addf %34, %35 : vector<8x128xf32>
    %37 = arith.negf %36 : vector<8x128xf32>
    %38 = math.exp %37 : vector<8x128xf32>
    %cst_18 = arith.constant 1.000000e+00 : f32
    %39 = vector.broadcast %cst_18 : f32 to vector<8x128xf32>
    %40 = arith.addf %39, %38 : vector<8x128xf32>
    %41 = arith.divf %39, %40 : vector<8x128xf32>
    %c0_19 = arith.constant 0 : index
    %c0_20 = arith.constant 0 : index
    %42 = vector.load %arg5[%c0_19, %c0_20] : memref<128x128xf32, #tpu.memory_space<vmem>>, vector<128x128xf32>
    %c0_21 = arith.constant 0 : index
    %c0_22 = arith.constant 0 : index
    %43 = vector.load %arg6[%c0_21, %c0_22] : memref<1x128xf32, #tpu.memory_space<vmem>>, vector<1x128xf32>
    %cst_23 = arith.constant dense<0.000000e+00> : vector<128xf32>
    %44 = vector.multi_reduction <add>, %41, %cst_23 [0] : vector<8x128xf32> to vector<128xf32>
    %45 = vector.shape_cast %44 : vector<128xf32> to vector<1x128xf32>
    %cst_24 = arith.constant 8.000000e+00 : f32
    %46 = vector.broadcast %cst_24 : f32 to vector<1x128xf32>
    %47 = arith.divf %45, %46 : vector<1x128xf32>
    %48 = arith.mulf %41, %41 : vector<8x128xf32>
    %cst_25 = arith.constant dense<0.000000e+00> : vector<128xf32>
    %49 = vector.multi_reduction <add>, %48, %cst_25 [0] : vector<8x128xf32> to vector<128xf32>
    %50 = vector.shape_cast %49 : vector<128xf32> to vector<1x128xf32>
    %cst_26 = arith.constant 8.000000e+00 : f32
    %51 = vector.broadcast %cst_26 : f32 to vector<1x128xf32>
    %52 = arith.divf %50, %51 : vector<1x128xf32>
    %53 = arith.mulf %47, %47 : vector<1x128xf32>
    %54 = arith.subf %52, %53 : vector<1x128xf32>
    %cst_27 = arith.constant 0.000000e+00 : f32
    %55 = vector.broadcast %cst_27 : f32 to vector<1x128xf32>
    %56 = arith.maximumf %54, %55 : vector<1x128xf32>
    %cst_28 = arith.constant 9.99999974E-6 : f32
    %57 = vector.broadcast %cst_28 : f32 to vector<1x128xf32>
    %58 = arith.addf %56, %57 : vector<1x128xf32>
    %59 = math.rsqrt %58 : vector<1x128xf32>
    %60 = tpu.transpose %59, [1, 0] : vector<1x128xf32> -> vector<128x1xf32>
    %61 = vector.broadcast %60 : vector<128x1xf32> to vector<128x128xf32>
    %62 = arith.mulf %42, %61 : vector<128x128xf32>
    %cst_29 = arith.constant dense<0.000000e+00> : vector<1x128xf32>
    %63 = tpu.matmul %47, %62, %cst_29 {dimension_numbers = #tpu.dot_dimension_numbers<[1], [0], [0], [1], [0, 0, 1, 1], [], []>} : vector<1x128xf32>, vector<128x128xf32>, vector<1x128xf32> -> vector<1x128xf32>
    %64 = arith.subf %43, %63 : vector<1x128xf32>
    %cst_30 = arith.constant dense<0.000000e+00> : vector<8x128xf32>
    %65 = tpu.matmul %41, %62, %cst_30 {dimension_numbers = #tpu.dot_dimension_numbers<[1], [0], [0], [1], [0, 0, 1, 1], [], []>} : vector<8x128xf32>, vector<128x128xf32>, vector<8x128xf32> -> vector<8x128xf32>
    %66 = vector.broadcast %64 : vector<1x128xf32> to vector<8x128xf32>
    %67 = arith.addf %65, %66 : vector<8x128xf32>
    %c0_31 = arith.constant 0 : index
    %c0_32 = arith.constant 0 : index
    %68 = vector.load %arg7[%c0_31, %c0_32] : memref<8x128xf32, #tpu.memory_space<vmem>>, vector<8x128xf32>
    tpu.vector_store %arg7[%c0_31, %c0_32], %67 {strides = array<i32>} : memref<8x128xf32, #tpu.memory_space<vmem>>, vector<8x128xf32>,
    return
  }
}

</mosaic_0001>

<llo_original>
// kernel: _lambda_.1
$region0: #{_lambda_.1}
  #allocation0 [shape = 'u32[]', space=smem, size = 0x4, offset = 0x4, fixed_abs, tag = 'smem constant byte address 0x4 - core index']
  #allocation1 [shape = 'u32[144,128]{1,0:T(1,128)}', space=vmem, size = 0x12000, scoped, tag = 'internal scratch']
  %s0 = inlined_call_operand.hbm [shape: f32[8,16], index: 0, kind: input, shape index: {}]
  %s1 = inlined_call_operand.hbm [shape: f32[16,128], index: 1, kind: input, shape index: {}]
  %s2 = inlined_call_operand.vmem [shape: f32[1,128], index: 2, kind: input, shape index: {}]
  %s3 = inlined_call_operand.hbm [shape: f32[128,128], index: 3, kind: input, shape index: {}]
  %s4 = inlined_call_operand.vmem [shape: f32[1,128], index: 4, kind: input, shape index: {}]
  %s5 = inlined_call_operand.hbm [shape: f32[128,128], index: 5, kind: input, shape index: {}]
  %s6 = inlined_call_operand.vmem [shape: f32[1,128], index: 6, kind: input, shape index: {}]
  %s7 = inlined_call_operand.hbm [shape: f32[8,128], index: 7, kind: output, shape index: {}]
  %s8 = sld [smem:[#allocation0]]
  $region54: #{_lambda_.1} parent=0
    _
  %s10 = ssub.s32 1, %s8
  %s11 = scalar_select 0, %s10, %s8
  $region1: #{_lambda_.1} parent=0
    #allocation2 [shape = 'u8[4096]{0}', space=vmem, size = 0x1000, scoped, tag = 'input window, operand 0, single buffered']
    #allocation3 [shape = 's32[1]{0}', space=sflag, size = 0x4, scoped, tag = 'scoped memory for _lambda_.1']
    #allocation4 [shape = 's32[1]{0}', space=sflag, size = 0x4, scoped, tag = 'scoped memory for _lambda_.1']
    #allocation5 [shape = 'u8[8192]{0}', space=vmem, size = 0x2000, scoped, tag = 'input window, operand 1, single buffered']
    #allocation6 [shape = 's32[1]{0}', space=sflag, size = 0x4, scoped, tag = 'scoped memory for _lambda_.1']
    #allocation7 [shape = 'u8[65536]{0}', space=vmem, size = 0x10000, scoped, tag = 'input window, operand 3, single buffered']
    #allocation8 [shape = 'u8[65536]{0}', space=vmem, size = 0x10000, scoped, tag = 'input window, operand 5, single buffered']
    #allocation9 [shape = 's32[1]{0}', space=sflag, size = 0x4, scoped, tag = 'scoped memory for _lambda_.1']
    #allocation10 [shape = 'u8[4096]{0}', space=vmem, size = 0x1000, scoped, tag = 'output window, operand 0, single buffered']
    %12 = vsyncpa [#allocation3], 0
    %13 = vsyncpa [#allocation6], 0
    %14 = vsyncpa [#allocation9], 0
    %15 = vsyncpa [#allocation4], 0
    // Predicated region
    $region2: #{_lambda_.1} parent=1 // pred_check
      _
    $region3: #{_lambda_.1} parent=1 // pred_check_branch
      %17 = sbr.rel (0) target = $region5
    $region4: #{_lambda_.1} parent=1 // pred_region
      %s19 = ssub.s32 128, 128
      %20 = vsyncadd [#allocation3], %s19
      %s22 = sshll.u32 [#allocation2], 4
      %s23 = int_to_ptr.vmem [resolvable:$true] %s22
      %25 = dma.hbm_to_vmem [thread:$0]  %s0, 128, %s23, [#allocation3]
    $region5: #{_lambda_.1} parent=1 // pred_fallthru
      _
    // Predicated region
    $region6: #{_lambda_.1} parent=1 // pred_check
      _
    $region7: #{_lambda_.1} parent=1 // pred_check_branch
      %27 = sbr.rel (0) target = $region9
    $region8: #{_lambda_.1} parent=1 // pred_region
      %s29 = ssub.s32 256, 256
      %30 = vsyncadd [#allocation6], %s29
      %s31 = sshll.u32 [#allocation5], 4
      %s32 = int_to_ptr.vmem [resolvable:$true] %s31
      %37 = dma.hbm_to_vmem [thread:$0]  %s1, 256, %s32, [#allocation6], 128, 128, 8
    $region9: #{_lambda_.1} parent=1 // pred_fallthru
      _
    // Predicated region
    $region10: #{_lambda_.1} parent=1 // pred_check
      _
    $region11: #{_lambda_.1} parent=1 // pred_check_branch
      %39 = sbr.rel (0) target = $region13
    $region12: #{_lambda_.1} parent=1 // pred_region
      _
    $region13: #{_lambda_.1} parent=1 // pred_fallthru
      _
    // Predicated region
    $region14: #{_lambda_.1} parent=1 // pred_check
      _
    $region15: #{_lambda_.1} parent=1 // pred_check_branch
      %41 = sbr.rel (0) target = $region17
    $region16: #{_lambda_.1} parent=1 // pred_region
      %s43 = ssub.s32 2048, 2048
      %44 = vsyncadd [#allocation6], %s43
      %s45 = sshll.u32 [#allocation7], 4
      %s46 = int_to_ptr.vmem [resolvable:$true] %s45
      %51 = dma.hbm_to_vmem [thread:$0]  %s3, 2048, %s46, [#allocation6], 128, 128, 8
    $region17: #{_lambda_.1} parent=1 // pred_fallthru
      _
    // Predicated region
    $region18: #{_lambda_.1} parent=1 // pred_check
      _
    $region19: #{_lambda_.1} parent=1 // pred_check_branch
      %53 = sbr.rel (0) target = $region21
    $region20: #{_lambda_.1} parent=1 // pred_region
      _
    $region21: #{_lambda_.1} parent=1 // pred_fallthru
      _
    // Predicated region
    $region22: #{_lambda_.1} parent=1 // pred_check
      _
    $region23: #{_lambda_.1} parent=1 // pred_check_branch
      %55 = sbr.rel (0) target = $region25
    $region24: #{_lambda_.1} parent=1 // pred_region
      %s57 = ssub.s32 2048, 2048
      %58 = vsyncadd [#allocation9], %s57
      %s59 = sshll.u32 [#allocation8], 4
      %s60 = int_to_ptr.vmem [resolvable:$true] %s59
      %65 = dma.hbm_to_vmem [thread:$0]  %s5, 2048, %s60, [#allocation9], 128, 128, 8
    $region25: #{_lambda_.1} parent=1 // pred_fallthru
      _
    // Predicated region
    $region26: #{_lambda_.1} parent=1 // pred_check
      _
    $region27: #{_lambda_.1} parent=1 // pred_check_branch
      %67 = sbr.rel (0) target = $region29
    $region28: #{_lambda_.1} parent=1 // pred_region
      _
    $region29: #{_lambda_.1} parent=1 // pred_fallthru
      _
    // Predicated region
    $region30: #{_lambda_.1} parent=1 // pred_check
      _
    $region31: #{_lambda_.1} parent=1 // pred_check_branch
      %69 = sbr.rel (0) target = $region33
    $region32: #{_lambda_.1} parent=1 // pred_region
      %70 = dma.done [#allocation3], 128
    $region33: #{_lambda_.1} parent=1 // pred_fallthru
      _
    // Predicated region
    $region34: #{_lambda_.1} parent=1 // pred_check
      _
    $region35: #{_lambda_.1} parent=1 // pred_check_branch
      %72 = sbr.rel (0) target = $region37
    $region36: #{_lambda_.1} parent=1 // pred_region
      %73 = dma.done [#allocation6], 256
    $region37: #{_lambda_.1} parent=1 // pred_fallthru
      _
    // Predicated region
    $region38: #{_lambda_.1} parent=1 // pred_check
      _
    $region39: #{_lambda_.1} parent=1 // pred_check_branch
      %75 = sbr.rel (0) target = $region41
    $region40: #{_lambda_.1} parent=1 // pred_region
      %76 = dma.done [#allocation6], 2048
    $region41: #{_lambda_.1} parent=1 // pred_fallthru
      _
    // Predicated region
    $region42: #{_lambda_.1} parent=1 // pred_check
      _
    $region43: #{_lambda_.1} parent=1 // pred_check_branch
      %78 = sbr.rel (0) target = $region45
    $region44: #{_lambda_.1} parent=1 // pred_region
      %79 = dma.done [#allocation9], 2048
    $region45: #{_lambda_.1} parent=1 // pred_fallthru
      _
    %v80 = vld [vmem:[#allocation2] sm:$0xff]
    %v81 = vld [vmem:[#allocation5] sm:$0xff]
    %v82 = vld [vmem:[#allocation5 + $0x8] sm:$0xff]
    %v83 = vld [vmem:[%s2] sm:$0x1]
    %v85 = vlaneseq
    %v86 = vshrl.u32 %v85, 7
    %v87 = vsub.s32 0, %v86
    %v88 = vrot.slane %v83, %v87
    %vm90 = vcmask 130048
    %v92 = vsel %vm90, %v80, 0
    %94 = vmatprep.subr.mxu0 0.0
    %95 = vmatpush1.msra.mxu0 0.0
    %96 = vmatprep.subr.mxu0 0.0
    %97 = vmatpush1.msra.mxu0 0.0
    %98 = vmatprep.subr.mxu0 0.0
    %99 = vmatpush1.msra.mxu0 0.0
    %100 = vmatprep.subr.mxu0 0.0
    %101 = vmatpush1.msra.mxu0 0.0
    %102 = vmatprep.subr.mxu0 0.0
    %103 = vmatpush1.msra.mxu0 0.0
    %104 = vmatprep.subr.mxu0 0.0
    %105 = vmatpush1.msra.mxu0 0.0
    %106 = vmatprep.subr.mxu0 0.0
    %107 = vmatpush1.msra.mxu0 0.0
    %108 = vmatprep.subr.mxu0 0.0
    %109 = vmatpush1.msra.mxu0 0.0
    %110 = vmatprep.subr.mxu0 0.0
    %111 = vmatpush1.msra.mxu0 0.0
    %112 = vmatprep.subr.mxu0 0.0
    %113 = vmatpush1.msra.mxu0 0.0
    %114 = vmatprep.subr.mxu0 0.0
    %115 = vmatpush1.msra.mxu0 0.0
    %116 = vmatprep.subr.mxu0 0.0
    %117 = vmatpush1.msra.mxu0 0.0
    %118 = vmatprep.subr.mxu0 0.0
    %119 = vmatpush1.msra.mxu0 0.0
    %120 = vmatprep.subr.mxu0 0.0
    %121 = vmatpush1.msra.mxu0 0.0
    %122 = vmatprep.subr.mxu0 0.0
    %123 = vmatpush1.msra.mxu0 %v82
    %124 = vmatprep.subr.mxu0 0.0
    %125 = vmatpush1.msra.mxu0 %v81
    %126 = vmatprep.subr.mxu0 0.0
    %127 = vmatpush2.msra.mxu0 0.0
    %128 = vmatprep.subr.mxu0 0.0
    %129 = vmatpush2.msra.mxu0 0.0
    %130 = vmatprep.subr.mxu0 0.0
    %131 = vmatpush2.msra.mxu0 0.0
    %132 = vmatprep.subr.mxu0 0.0
    %133 = vmatpush2.msra.mxu0 0.0
    %134 = vmatprep.subr.mxu0 0.0
    %135 = vmatpush2.msra.mxu0 0.0
    %136 = vmatprep.subr.mxu0 0.0
    %137 = vmatpush2.msra.mxu0 0.0
    %138 = vmatprep.subr.mxu0 0.0
    %139 = vmatpush2.msra.mxu0 0.0
    %140 = vmatprep.subr.mxu0 0.0
    %141 = vmatpush2.msra.mxu0 0.0
    %142 = vmatprep.subr.mxu0 0.0
    %143 = vmatpush2.msra.mxu0 0.0
    %144 = vmatprep.subr.mxu0 0.0
    %145 = vmatpush2.msra.mxu0 0.0
    %146 = vmatprep.subr.mxu0 0.0
    %147 = vmatpush2.msra.mxu0 0.0
    %148 = vmatprep.subr.mxu0 0.0
    %149 = vmatpush2.msra.mxu0 0.0
    %150 = vmatprep.subr.mxu0 0.0
    %151 = vmatpush2.msra.mxu0 0.0
    %152 = vmatprep.subr.mxu0 0.0
    %153 = vmatpush2.msra.mxu0 0.0
    %154 = vmatprep.subr.mxu0 0.0
    %155 = vmatpush2.msra.mxu0 0.0
    %156 = vmatprep.subr.mxu0 0.0
    %157 = vmatpush2.msra.mxu0 0.0
    %158 = vmatprep.mubr.f32.mxu0 0.0
    %159 = vmatmul.mubr.f32.gmra.mxu0 %v92
    %v160 = vpop.f32.mrf.mxu0
    %v161 = vadd.f32 %v88, %v160
    %v162 = vpop.f32.mrf.mxu0
    %163 = vdwg.mxu0
    %v164 = vxor.u32 %v161, 2147483648
    %v165 = vmul.f32 %v164, 1.442695
    %v166 = vpow.pop %v165
    %v167 = vadd.f32 %v166, 1.0
    %v168 = vrcp.pop %v167
    %v169 = vmul.f32 1.0, %v168
    %v170 = vld [vmem:[#allocation7] sm:$0xff]
    %v171 = vld [vmem:[#allocation7 + $0x8] sm:$0xff]
    %v172 = vld [vmem:[#allocation7 + $0x10] sm:$0xff]
    %v173 = vld [vmem:[#allocation7 + $0x18] sm:$0xff]
    %v174 = vld [vmem:[#allocation7 + $0x20] sm:$0xff]
    %v175 = vld [vmem:[#allocation7 + $0x28] sm:$0xff]
    %v176 = vld [vmem:[#allocation7 + $0x30] sm:$0xff]
    %v177 = vld [vmem:[#allocation7 + $0x38] sm:$0xff]
    %v178 = vld [vmem:[#allocation7 + $0x40] sm:$0xff]
    %v179 = vld [vmem:[#allocation7 + $0x48] sm:$0xff]
    %v180 = vld [vmem:[#allocation7 + $0x50] sm:$0xff]
    %v181 = vld [vmem:[#allocation7 + $0x58] sm:$0xff]
    %v182 = vld [vmem:[#allocation7 + $0x60] sm:$0xff]
    %v183 = vld [vmem:[#allocation7 + $0x68] sm:$0xff]
    %v184 = vld [vmem:[#allocation7 + $0x70] sm:$0xff]
    %v185 = vld [vmem:[#allocation7 + $0x78] sm:$0xff]
    %v186 = vld [vmem:[%s4] sm:$0x1]
    %v187 = vrot.slane %v169, 4
    %v188 = vadd.f32 %v169, %v187
    %v189 = vrot.slane %v188, 2
    %v190 = vadd.f32 %v188, %v189
    %v191 = vrot.slane %v190, 1
    %v192 = vadd.f32 %v190, %v191
    %v193 = vrcp.pop 8.0
    %v194 = vmul.f32 %v192, %v193
    %v195 = vmul.f32 %v169, %v169
    %v196 = vrot.slane %v195, 4
    %v197 = vadd.f32 %v195, %v196
    %v198 = vrot.slane %v197, 2
    %v199 = vadd.f32 %v197, %v198
    %v200 = vrot.slane %v199, 1
    %v201 = vadd.f32 %v199, %v200
    %v202 = vmul.f32 %v201, %v193
    %v203 = vmul.f32 %v194, %v194
    %v204 = vsub.f32 %v202, %v203
    %v205 = vmax.f32 %v204, 0.0
    %v206 = vadd.f32 %v205, 1e-05
    %v207 = vrsqrt.pop %v206
    %208 = vxpose.xlu0.b32.start [1/16] %v207, 128
    %209 = vxpose.xlu0.b32.cont [2/16] 0.0, 128
    %210 = vxpose.xlu0.b32.cont [3/16] 0.0, 128
    %211 = vxpose.xlu0.b32.cont [4/16] 0.0, 128
    %212 = vxpose.xlu0.b32.cont [5/16] 0.0, 128
    %213 = vxpose.xlu0.b32.cont [6/16] 0.0, 128
    %214 = vxpose.xlu0.b32.cont [7/16] 0.0, 128
    %215 = vxpose.xlu0.b32.cont [8/16] 0.0, 128
    %216 = vxpose.xlu0.b32.cont [9/16] 0.0, 128
    %217 = vxpose.xlu0.b32.cont [10/16] 0.0, 128
    %218 = vxpose.xlu0.b32.cont [11/16] 0.0, 128
    %219 = vxpose.xlu0.b32.cont [12/16] 0.0, 128
    %220 = vxpose.xlu0.b32.cont [13/16] 0.0, 128
    %221 = vxpose.xlu0.b32.cont [14/16] 0.0, 128
    %222 = vxpose.xlu0.b32.cont [15/16] 0.0, 128
    %223 = vxpose.xlu0.b32.end [16/16] 0.0, 128
    %v224 = vpop.trf.xlu0
    %v225 = vpop.trf.xlu0
    %v226 = vpop.trf.xlu0
    %v227 = vpop.trf.xlu0
    %v228 = vpop.trf.xlu0
    %v229 = vpop.trf.xlu0
    %v230 = vpop.trf.xlu0
    %v231 = vpop.trf.xlu0
    %v232 = vpop.trf.xlu0
    %v233 = vpop.trf.xlu0
    %v234 = vpop.trf.xlu0
    %v235 = vpop.trf.xlu0
    %v236 = vpop.trf.xlu0
    %v237 = vpop.trf.xlu0
    %v238 = vpop.trf.xlu0
    %v239 = vpop.trf.xlu0
    %241 = vset.pattern.permute.xlu0 0
    %242 = vperm.xlu0 %241, %v224
    %v243 = vpop.permute.xlu0 %242
    %246 = vset.pattern.permute.xlu0 0
    %247 = vperm.xlu0 %246, %v225
    %v248 = vpop.permute.xlu0 %247
    %251 = vset.pattern.permute.xlu0 0
    %252 = vperm.xlu0 %251, %v226
    %v253 = vpop.permute.xlu0 %252
    %256 = vset.pattern.permute.xlu0 0
    %257 = vperm.xlu0 %256, %v227
    %v258 = vpop.permute.xlu0 %257
    %261 = vset.pattern.permute.xlu0 0
    %262 = vperm.xlu0 %261, %v228
    %v263 = vpop.permute.xlu0 %262
    %266 = vset.pattern.permute.xlu0 0
    %267 = vperm.xlu0 %266, %v229
    %v268 = vpop.permute.xlu0 %267
    %271 = vset.pattern.permute.xlu0 0
    %272 = vperm.xlu0 %271, %v230
    %v273 = vpop.permute.xlu0 %272
    %276 = vset.pattern.permute.xlu0 0
    %277 = vperm.xlu0 %276, %v231
    %v278 = vpop.permute.xlu0 %277
    %281 = vset.pattern.permute.xlu0 0
    %282 = vperm.xlu0 %281, %v232
    %v283 = vpop.permute.xlu0 %282
    %286 = vset.pattern.permute.xlu0 0
    %287 = vperm.xlu0 %286, %v233
    %v288 = vpop.permute.xlu0 %287
    %291 = vset.pattern.permute.xlu0 0
    %292 = vperm.xlu0 %291, %v234
    %v293 = vpop.permute.xlu0 %292
    %296 = vset.pattern.permute.xlu0 0
    %297 = vperm.xlu0 %296, %v235
    %v298 = vpop.permute.xlu0 %297
    %301 = vset.pattern.permute.xlu0 0
    %302 = vperm.xlu0 %301, %v236
    %v303 = vpop.permute.xlu0 %302
    %306 = vset.pattern.permute.xlu0 0
    %307 = vperm.xlu0 %306, %v237
    %v308 = vpop.permute.xlu0 %307
    %311 = vset.pattern.permute.xlu0 0
    %312 = vperm.xlu0 %311, %v238
    %v313 = vpop.permute.xlu0 %312
    %316 = vset.pattern.permute.xlu0 0
    %317 = vperm.xlu0 %316, %v239
    %v318 = vpop.permute.xlu0 %317
    %v320 = vmul.f32 %v170, %v243
    %v321 = vmul.f32 %v171, %v248
    %v322 = vmul.f32 %v172, %v253
    %v323 = vmul.f32 %v173, %v258
    %v324 = vmul.f32 %v174, %v263
    %v325 = vmul.f32 %v175, %v268
    %v326 = vmul.f32 %v176, %v273
    %v327 = vmul.f32 %v177, %v278
    %v328 = vmul.f32 %v178, %v283
    %v329 = vmul.f32 %v179, %v288
    %v330 = vmul.f32 %v180, %v293
    %v331 = vmul.f32 %v181, %v298
    %v332 = vmul.f32 %v182, %v303
    %v333 = vmul.f32 %v183, %v308
    %v334 = vmul.f32 %v184, %v313
    %v335 = vmul.f32 %v185, %v318
    %336 = vmatprep.subr.mxu0 0.0
    %337 = vmatpush1.msra.mxu0 %v335
    %338 = vmatprep.subr.mxu0 0.0
    %339 = vmatpush1.msra.mxu0 %v334
    %340 = vmatprep.subr.mxu0 0.0
    %341 = vmatpush1.msra.mxu0 %v333
    %342 = vmatprep.subr.mxu0 0.0
    %343 = vmatpush1.msra.mxu0 %v332
    %344 = vmatprep.subr.mxu0 0.0
    %345 = vmatpush1.msra.mxu0 %v331
    %346 = vmatprep.subr.mxu0 0.0
    %347 = vmatpush1.msra.mxu0 %v330
    %348 = vmatprep.subr.mxu0 0.0
    %349 = vmatpush1.msra.mxu0 %v329
    %350 = vmatprep.subr.mxu0 0.0
    %351 = vmatpush1.msra.mxu0 %v328
    %352 = vmatprep.subr.mxu0 0.0
    %353 = vmatpush1.msra.mxu0 %v327
    %354 = vmatprep.subr.mxu0 0.0
    %355 = vmatpush1.msra.mxu0 %v326
    %356 = vmatprep.subr.mxu0 0.0
    %357 = vmatpush1.msra.mxu0 %v325
    %358 = vmatprep.subr.mxu0 0.0
    %359 = vmatpush1.msra.mxu0 %v324
    %360 = vmatprep.subr.mxu0 0.0
    %361 = vmatpush1.msra.mxu0 %v323
    %362 = vmatprep.subr.mxu0 0.0
    %363 = vmatpush1.msra.mxu0 %v322
    %364 = vmatprep.subr.mxu0 0.0
    %365 = vmatpush1.msra.mxu0 %v321
    %366 = vmatprep.subr.mxu0 0.0
    %367 = vmatpush1.msra.mxu0 %v320
    %368 = vmatprep.subr.mxu0 0.0
    %369 = vmatpush2.msra.mxu0 0.0
    %370 = vmatprep.subr.mxu0 0.0
    %371 = vmatpush2.msra.mxu0 0.0
    %372 = vmatprep.subr.mxu0 0.0
    %373 = vmatpush2.msra.mxu0 0.0
    %374 = vmatprep.subr.mxu0 0.0
    %375 = vmatpush2.msra.mxu0 0.0
    %376 = vmatprep.subr.mxu0 0.0
    %377 = vmatpush2.msra.mxu0 0.0
    %378 = vmatprep.subr.mxu0 0.0
    %379 = vmatpush2.msra.mxu0 0.0
    %380 = vmatprep.subr.mxu0 0.0
    %381 = vmatpush2.msra.mxu0 0.0
    %382 = vmatprep.subr.mxu0 0.0
    %383 = vmatpush2.msra.mxu0 0.0
    %384 = vmatprep.subr.mxu0 0.0
    %385 = vmatpush2.msra.mxu0 0.0
    %386 = vmatprep.subr.mxu0 0.0
    %387 = vmatpush2.msra.mxu0 0.0
    %388 = vmatprep.subr.mxu0 0.0
    %389 = vmatpush2.msra.mxu0 0.0
    %390 = vmatprep.subr.mxu0 0.0
    %391 = vmatpush2.msra.mxu0 0.0
    %392 = vmatprep.subr.mxu0 0.0
    %393 = vmatpush2.msra.mxu0 0.0
    %394 = vmatprep.subr.mxu0 0.0
    %395 = vmatpush2.msra.mxu0 0.0
    %396 = vmatprep.subr.mxu0 0.0
    %397 = vmatpush2.msra.mxu0 0.0
    %398 = vmatprep.subr.mxu0 0.0
    %399 = vmatpush2.msra.mxu0 0.0
    %400 = vmatprep.mubr.f32.mxu0 0.0
    %401 = vmatmul.mubr.f32.gmra.mxu0 %v194
    %v402 = vpop.f32.mrf.mxu0
    %v403 = vadd.f32 0.0, %v402
    %v404 = vpop.f32.mrf.mxu0
    %405 = vdwg.mxu0
    %v406 = vsub.f32 %v186, %v403
    %v408 = vlaneseq
    %v409 = vshrl.u32 %v408, 7
    %v410 = vsub.s32 0, %v409
    %v411 = vrot.slane %v406, %v410
    %413 = vmatprep.subr.mxu0 0.0
    %414 = vmatpush1.msra.mxu0 %v335
    %415 = vmatprep.subr.mxu0 0.0
    %416 = vmatpush1.msra.mxu0 %v334
    %417 = vmatprep.subr.mxu0 0.0
    %418 = vmatpush1.msra.mxu0 %v333
    %419 = vmatprep.subr.mxu0 0.0
    %420 = vmatpush1.msra.mxu0 %v332
    %421 = vmatprep.subr.mxu0 0.0
    %422 = vmatpush1.msra.mxu0 %v331
    %423 = vmatprep.subr.mxu0 0.0
    %424 = vmatpush1.msra.mxu0 %v330
    %425 = vmatprep.subr.mxu0 0.0
    %426 = vmatpush1.msra.mxu0 %v329
    %427 = vmatprep.subr.mxu0 0.0
    %428 = vmatpush1.msra.mxu0 %v328
    %429 = vmatprep.subr.mxu0 0.0
    %430 = vmatpush1.msra.mxu0 %v327
    %431 = vmatprep.subr.mxu0 0.0
    %432 = vmatpush1.msra.mxu0 %v326
    %433 = vmatprep.subr.mxu0 0.0
    %434 = vmatpush1.msra.mxu0 %v325
    %435 = vmatprep.subr.mxu0 0.0
    %436 = vmatpush1.msra.mxu0 %v324
    %437 = vmatprep.subr.mxu0 0.0
    %438 = vmatpush1.msra.mxu0 %v323
    %439 = vmatprep.subr.mxu0 0.0
    %440 = vmatpush1.msra.mxu0 %v322
    %441 = vmatprep.subr.mxu0 0.0
    %442 = vmatpush1.msra.mxu0 %v321
    %443 = vmatprep.subr.mxu0 0.0
    %444 = vmatpush1.msra.mxu0 %v320
    %445 = vmatprep.subr.mxu0 0.0
    %446 = vmatpush2.msra.mxu0 0.0
    %447 = vmatprep.subr.mxu0 0.0
    %448 = vmatpush2.msra.mxu0 0.0
    %449 = vmatprep.subr.mxu0 0.0
    %450 = vmatpush2.msra.mxu0 0.0
    %451 = vmatprep.subr.mxu0 0.0
    %452 = vmatpush2.msra.mxu0 0.0
    %453 = vmatprep.subr.mxu0 0.0
    %454 = vmatpush2.msra.mxu0 0.0
    %455 = vmatprep.subr.mxu0 0.0
    %456 = vmatpush2.msra.mxu0 0.0
    %457 = vmatprep.subr.mxu0 0.0
    %458 = vmatpush2.msra.mxu0 0.0
    %459 = vmatprep.subr.mxu0 0.0
    %460 = vmatpush2.msra.mxu0 0.0
    %461 = vmatprep.subr.mxu0 0.0
    %462 = vmatpush2.msra.mxu0 0.0
    %463 = vmatprep.subr.mxu0 0.0
    %464 = vmatpush2.msra.mxu0 0.0
    %465 = vmatprep.subr.mxu0 0.0
    %466 = vmatpush2.msra.mxu0 0.0
    %467 = vmatprep.subr.mxu0 0.0
    %468 = vmatpush2.msra.mxu0 0.0
    %469 = vmatprep.subr.mxu0 0.0
    %470 = vmatpush2.msra.mxu0 0.0
    %471 = vmatprep.subr.mxu0 0.0
    %472 = vmatpush2.msra.mxu0 0.0
    %473 = vmatprep.subr.mxu0 0.0
    %474 = vmatpush2.msra.mxu0 0.0
    %475 = vmatprep.subr.mxu0 0.0
    %476 = vmatpush2.msra.mxu0 0.0
    %477 = vmatprep.mubr.f32.mxu0 0.0
    %478 = vmatmul.mubr.f32.gmra.mxu0 %v169
    %v479 = vpop.f32.mrf.mxu0
    %v480 = vadd.f32 %v411, %v479
    %v481 = vpop.f32.mrf.mxu0
    %482 = vdwg.mxu0
    %v483 = vxor.u32 %v480, 2147483648
    %v484 = vmul.f32 %v483, 1.442695
    %v485 = vpow.pop %v484
    %v486 = vadd.f32 %v485, 1.0
    %v487 = vrcp.pop %v486
    %v488 = vmul.f32 1.0, %v487
    %v489 = vld [vmem:[#allocation8] sm:$0xff]
    %v490 = vld [vmem:[#allocation8 + $0x8] sm:$0xff]
    %v491 = vld [vmem:[#allocation8 + $0x10] sm:$0xff]
    %v492 = vld [vmem:[#allocation8 + $0x18] sm:$0xff]
    %v493 = vld [vmem:[#allocation8 + $0x20] sm:$0xff]
    %v494 = vld [vmem:[#allocation8 + $0x28] sm:$0xff]
    %v495 = vld [vmem:[#allocation8 + $0x30] sm:$0xff]
    %v496 = vld [vmem:[#allocation8 + $0x38] sm:$0xff]
    %v497 = vld [vmem:[#allocation8 + $0x40] sm:$0xff]
    %v498 = vld [vmem:[#allocation8 + $0x48] sm:$0xff]
    %v499 = vld [vmem:[#allocation8 + $0x50] sm:$0xff]
    %v500 = vld [vmem:[#allocation8 + $0x58] sm:$0xff]
    %v501 = vld [vmem:[#allocation8 + $0x60] sm:$0xff]
    %v502 = vld [vmem:[#allocation8 + $0x68] sm:$0xff]
    %v503 = vld [vmem:[#allocation8 + $0x70] sm:$0xff]
    %v504 = vld [vmem:[#allocation8 + $0x78] sm:$0xff]
    %v505 = vld [vmem:[%s6] sm:$0x1]
    %v506 = vrot.slane %v488, 4
    %v507 = vadd.f32 %v488, %v506
    %v508 = vrot.slane %v507, 2
    %v509 = vadd.f32 %v507, %v508
    %v510 = vrot.slane %v509, 1
    %v511 = vadd.f32 %v509, %v510
    %v512 = vmul.f32 %v511, %v193
    %v513 = vmul.f32 %v488, %v488
    %v514 = vrot.slane %v513, 4
    %v515 = vadd.f32 %v513, %v514
    %v516 = vrot.slane %v515, 2
    %v517 = vadd.f32 %v515, %v516
    %v518 = vrot.slane %v517, 1
    %v519 = vadd.f32 %v517, %v518
    %v520 = vmul.f32 %v519, %v193
    %v521 = vmul.f32 %v512, %v512
    %v522 = vsub.f32 %v520, %v521
    %v523 = vmax.f32 %v522, 0.0
    %v524 = vadd.f32 %v523, 1e-05
    %v525 = vrsqrt.pop %v524
    %526 = vxpose.xlu0.b32.start [1/16] %v525, 128
    %527 = vxpose.xlu0.b32.cont [2/16] 0.0, 128
    %528 = vxpose.xlu0.b32.cont [3/16] 0.0, 128
    %529 = vxpose.xlu0.b32.cont [4/16] 0.0, 128
    %530 = vxpose.xlu0.b32.cont [5/16] 0.0, 128
    %531 = vxpose.xlu0.b32.cont [6/16] 0.0, 128
    %532 = vxpose.xlu0.b32.cont [7/16] 0.0, 128
    %533 = vxpose.xlu0.b32.cont [8/16] 0.0, 128
    %534 = vxpose.xlu0.b32.cont [9/16] 0.0, 128
    %535 = vxpose.xlu0.b32.cont [10/16] 0.0, 128
    %536 = vxpose.xlu0.b32.cont [11/16] 0.0, 128
    %537 = vxpose.xlu0.b32.cont [12/16] 0.0, 128
    %538 = vxpose.xlu0.b32.cont [13/16] 0.0, 128
    %539 = vxpose.xlu0.b32.cont [14/16] 0.0, 128
    %540 = vxpose.xlu0.b32.cont [15/16] 0.0, 128
    %541 = vxpose.xlu0.b32.end [16/16] 0.0, 128
    %v542 = vpop.trf.xlu0
    %v543 = vpop.trf.xlu0
    %v544 = vpop.trf.xlu0
    %v545 = vpop.trf.xlu0
    %v546 = vpop.trf.xlu0
    %v547 = vpop.trf.xlu0
    %v548 = vpop.trf.xlu0
    %v549 = vpop.trf.xlu0
    %v550 = vpop.trf.xlu0
    %v551 = vpop.trf.xlu0
    %v552 = vpop.trf.xlu0
    %v553 = vpop.trf.xlu0
    %v554 = vpop.trf.xlu0
    %v555 = vpop.trf.xlu0
    %v556 = vpop.trf.xlu0
    %v557 = vpop.trf.xlu0
    %559 = vset.pattern.permute.xlu0 0
    %560 = vperm.xlu0 %559, %v542
    %v561 = vpop.permute.xlu0 %560
    %564 = vset.pattern.permute.xlu0 0
    %565 = vperm.xlu0 %564, %v543
    %v566 = vpop.permute.xlu0 %565
    %569 = vset.pattern.permute.xlu0 0
    %570 = vperm.xlu0 %569, %v544
    %v571 = vpop.permute.xlu0 %570
    %574 = vset.pattern.permute.xlu0 0
    %575 = vperm.xlu0 %574, %v545
    %v576 = vpop.permute.xlu0 %575
    %579 = vset.pattern.permute.xlu0 0
    %580 = vperm.xlu0 %579, %v546
    %v581 = vpop.permute.xlu0 %580
    %584 = vset.pattern.permute.xlu0 0
    %585 = vperm.xlu0 %584, %v547
    %v586 = vpop.permute.xlu0 %585
    %589 = vset.pattern.permute.xlu0 0
    %590 = vperm.xlu0 %589, %v548
    %v591 = vpop.permute.xlu0 %590
    %594 = vset.pattern.permute.xlu0 0
    %595 = vperm.xlu0 %594, %v549
    %v596 = vpop.permute.xlu0 %595
    %599 = vset.pattern.permute.xlu0 0
    %600 = vperm.xlu0 %599, %v550
    %v601 = vpop.permute.xlu0 %600
    %604 = vset.pattern.permute.xlu0 0
    %605 = vperm.xlu0 %604, %v551
    %v606 = vpop.permute.xlu0 %605
    %609 = vset.pattern.permute.xlu0 0
    %610 = vperm.xlu0 %609, %v552
    %v611 = vpop.permute.xlu0 %610
    %614 = vset.pattern.permute.xlu0 0
    %615 = vperm.xlu0 %614, %v553
    %v616 = vpop.permute.xlu0 %615
    %619 = vset.pattern.permute.xlu0 0
    %620 = vperm.xlu0 %619, %v554
    %v621 = vpop.permute.xlu0 %620
    %624 = vset.pattern.permute.xlu0 0
    %625 = vperm.xlu0 %624, %v555
    %v626 = vpop.permute.xlu0 %625
    %629 = vset.pattern.permute.xlu0 0
    %630 = vperm.xlu0 %629, %v556
    %v631 = vpop.permute.xlu0 %630
    %634 = vset.pattern.permute.xlu0 0
    %635 = vperm.xlu0 %634, %v557
    %v636 = vpop.permute.xlu0 %635
    %v638 = vmul.f32 %v489, %v561
    %v639 = vmul.f32 %v490, %v566
    %v640 = vmul.f32 %v491, %v571
    %v641 = vmul.f32 %v492, %v576
    %v642 = vmul.f32 %v493, %v581
    %v643 = vmul.f32 %v494, %v586
    %v644 = vmul.f32 %v495, %v591
    %v645 = vmul.f32 %v496, %v596
    %v646 = vmul.f32 %v497, %v601
    %v647 = vmul.f32 %v498, %v606
    %v648 = vmul.f32 %v499, %v611
    %v649 = vmul.f32 %v500, %v616
    %v650 = vmul.f32 %v501, %v621
    %v651 = vmul.f32 %v502, %v626
    %v652 = vmul.f32 %v503, %v631
    %v653 = vmul.f32 %v504, %v636
    %654 = vmatprep.subr.mxu0 0.0
    %655 = vmatpush1.msra.mxu0 %v653
    %656 = vmatprep.subr.mxu0 0.0
    %657 = vmatpush1.msra.mxu0 %v652
    %658 = vmatprep.subr.mxu0 0.0
    %659 = vmatpush1.msra.mxu0 %v651
    %660 = vmatprep.subr.mxu0 0.0
    %661 = vmatpush1.msra.mxu0 %v650
    %662 = vmatprep.subr.mxu0 0.0
    %663 = vmatpush1.msra.mxu0 %v649
    %664 = vmatprep.subr.mxu0 0.0
    %665 = vmatpush1.msra.mxu0 %v648
    %666 = vmatprep.subr.mxu0 0.0
    %667 = vmatpush1.msra.mxu0 %v647
    %668 = vmatprep.subr.mxu0 0.0
    %669 = vmatpush1.msra.mxu0 %v646
    %670 = vmatprep.subr.mxu0 0.0
    %671 = vmatpush1.msra.mxu0 %v645
    %672 = vmatprep.subr.mxu0 0.0
    %673 = vmatpush1.msra.mxu0 %v644
    %674 = vmatprep.subr.mxu0 0.0
    %675 = vmatpush1.msra.mxu0 %v643
    %676 = vmatprep.subr.mxu0 0.0
    %677 = vmatpush1.msra.mxu0 %v642
    %678 = vmatprep.subr.mxu0 0.0
    %679 = vmatpush1.msra.mxu0 %v641
    %680 = vmatprep.subr.mxu0 0.0
    %681 = vmatpush1.msra.mxu0 %v640
    %682 = vmatprep.subr.mxu0 0.0
    %683 = vmatpush1.msra.mxu0 %v639
    %684 = vmatprep.subr.mxu0 0.0
    %685 = vmatpush1.msra.mxu0 %v638
    %686 = vmatprep.subr.mxu0 0.0
    %687 = vmatpush2.msra.mxu0 0.0
    %688 = vmatprep.subr.mxu0 0.0
    %689 = vmatpush2.msra.mxu0 0.0
    %690 = vmatprep.subr.mxu0 0.0
    %691 = vmatpush2.msra.mxu0 0.0
    %692 = vmatprep.subr.mxu0 0.0
    %693 = vmatpush2.msra.mxu0 0.0
    %694 = vmatprep.subr.mxu0 0.0
    %695 = vmatpush2.msra.mxu0 0.0
    %696 = vmatprep.subr.mxu0 0.0
    %697 = vmatpush2.msra.mxu0 0.0
    %698 = vmatprep.subr.mxu0 0.0
    %699 = vmatpush2.msra.mxu0 0.0
    %700 = vmatprep.subr.mxu0 0.0
    %701 = vmatpush2.msra.mxu0 0.0
    %702 = vmatprep.subr.mxu0 0.0
    %703 = vmatpush2.msra.mxu0 0.0
    %704 = vmatprep.subr.mxu0 0.0
    %705 = vmatpush2.msra.mxu0 0.0
    %706 = vmatprep.subr.mxu0 0.0
    %707 = vmatpush2.msra.mxu0 0.0
    %708 = vmatprep.subr.mxu0 0.0
    %709 = vmatpush2.msra.mxu0 0.0
    %710 = vmatprep.subr.mxu0 0.0
    %711 = vmatpush2.msra.mxu0 0.0
    %712 = vmatprep.subr.mxu0 0.0
    %713 = vmatpush2.msra.mxu0 0.0
    %714 = vmatprep.subr.mxu0 0.0
    %715 = vmatpush2.msra.mxu0 0.0
    %716 = vmatprep.subr.mxu0 0.0
    %717 = vmatpush2.msra.mxu0 0.0
    %718 = vmatprep.mubr.f32.mxu0 0.0
    %719 = vmatmul.mubr.f32.gmra.mxu0 %v512
    %v720 = vpop.f32.mrf.mxu0
    %v721 = vadd.f32 0.0, %v720
    %v722 = vpop.f32.mrf.mxu0
    %723 = vdwg.mxu0
    %v724 = vsub.f32 %v505, %v721
    %v726 = vlaneseq
    %v727 = vshrl.u32 %v726, 7
    %v728 = vsub.s32 0, %v727
    %v729 = vrot.slane %v724, %v728
    %731 = vmatprep.subr.mxu0 0.0
    %732 = vmatpush1.msra.mxu0 %v653
    %733 = vmatprep.subr.mxu0 0.0
    %734 = vmatpush1.msra.mxu0 %v652
    %735 = vmatprep.subr.mxu0 0.0
    %736 = vmatpush1.msra.mxu0 %v651
    %737 = vmatprep.subr.mxu0 0.0
    %738 = vmatpush1.msra.mxu0 %v650
    %739 = vmatprep.subr.mxu0 0.0
    %740 = vmatpush1.msra.mxu0 %v649
    %741 = vmatprep.subr.mxu0 0.0
    %742 = vmatpush1.msra.mxu0 %v648
    %743 = vmatprep.subr.mxu0 0.0
    %744 = vmatpush1.msra.mxu0 %v647
    %745 = vmatprep.subr.mxu0 0.0
    %746 = vmatpush1.msra.mxu0 %v646
    %747 = vmatprep.subr.mxu0 0.0
    %748 = vmatpush1.msra.mxu0 %v645
    %749 = vmatprep.subr.mxu0 0.0
    %750 = vmatpush1.msra.mxu0 %v644
    %751 = vmatprep.subr.mxu0 0.0
    %752 = vmatpush1.msra.mxu0 %v643
    %753 = vmatprep.subr.mxu0 0.0
    %754 = vmatpush1.msra.mxu0 %v642
    %755 = vmatprep.subr.mxu0 0.0
    %756 = vmatpush1.msra.mxu0 %v641
    %757 = vmatprep.subr.mxu0 0.0
    %758 = vmatpush1.msra.mxu0 %v640
    %759 = vmatprep.subr.mxu0 0.0
    %760 = vmatpush1.msra.mxu0 %v639
    %761 = vmatprep.subr.mxu0 0.0
    %762 = vmatpush1.msra.mxu0 %v638
    %763 = vmatprep.subr.mxu0 0.0
    %764 = vmatpush2.msra.mxu0 0.0
    %765 = vmatprep.subr.mxu0 0.0
    %766 = vmatpush2.msra.mxu0 0.0
    %767 = vmatprep.subr.mxu0 0.0
    %768 = vmatpush2.msra.mxu0 0.0
    %769 = vmatprep.subr.mxu0 0.0
    %770 = vmatpush2.msra.mxu0 0.0
    %771 = vmatprep.subr.mxu0 0.0
    %772 = vmatpush2.msra.mxu0 0.0
    %773 = vmatprep.subr.mxu0 0.0
    %774 = vmatpush2.msra.mxu0 0.0
    %775 = vmatprep.subr.mxu0 0.0
    %776 = vmatpush2.msra.mxu0 0.0
    %777 = vmatprep.subr.mxu0 0.0
    %778 = vmatpush2.msra.mxu0 0.0
    %779 = vmatprep.subr.mxu0 0.0
    %780 = vmatpush2.msra.mxu0 0.0
    %781 = vmatprep.subr.mxu0 0.0
    %782 = vmatpush2.msra.mxu0 0.0
    %783 = vmatprep.subr.mxu0 0.0
    %784 = vmatpush2.msra.mxu0 0.0
    %785 = vmatprep.subr.mxu0 0.0
    %786 = vmatpush2.msra.mxu0 0.0
    %787 = vmatprep.subr.mxu0 0.0
    %788 = vmatpush2.msra.mxu0 0.0
    %789 = vmatprep.subr.mxu0 0.0
    %790 = vmatpush2.msra.mxu0 0.0
    %791 = vmatprep.subr.mxu0 0.0
    %792 = vmatpush2.msra.mxu0 0.0
    %793 = vmatprep.subr.mxu0 0.0
    %794 = vmatpush2.msra.mxu0 0.0
    %795 = vmatprep.mubr.f32.mxu0 0.0
    %796 = vmatmul.mubr.f32.gmra.mxu0 %v488
    %v797 = vpop.f32.mrf.mxu0
    %v798 = vadd.f32 %v729, %v797
    %v799 = vpop.f32.mrf.mxu0
    %800 = vdwg.mxu0
    %801 = vst [vmem:[#allocation10] sm:$0xff] %v798
    // Predicated region
    $region46: #{_lambda_.1} parent=1 // pred_check
      _
    $region47: #{_lambda_.1} parent=1 // pred_check_branch
      %803 = sbr.rel (0) target = $region49
    $region48: #{_lambda_.1} parent=1 // pred_region
      %s805 = ssub.s32 128, 128
      %806 = vsyncadd [#allocation4], %s805
      %s808 = sshll.u32 [#allocation10], 4
      %s809 = int_to_ptr.vmem [resolvable:$true] %s808
      %811 = dma.vmem_to_hbm [thread:$0]  %s809, 128, %s7, [#allocation4]
    $region49: #{_lambda_.1} parent=1 // pred_fallthru
      _
    // Predicated region
    $region50: #{_lambda_.1} parent=1 // pred_check
      _
    $region51: #{_lambda_.1} parent=1 // pred_check_branch
      %813 = sbr.rel (0) target = $region53
    $region52: #{_lambda_.1} parent=1 // pred_region
      %814 = dma.done [#allocation4], 128
    $region53: #{_lambda_.1} parent=1 // pred_fallthru
      _
    %815 = vsyncpa [#allocation3], 1
    %816 = vsyncpa [#allocation6], 1
    %817 = vsyncpa [#allocation9], 1
    %818 = vsyncpa [#allocation4], 1

</llo_original>
